<compile_context>
chip_gen: v7x
topology: tpu7x:2x2x1
jax: 0.10.0
libtpu: 0.0.40
codegen_flags: <defaults>
</compile_context>

<pallas_src>
import jax
import jax.numpy as jnp
from jax.experimental import pallas as pl
from jax.experimental.pallas import tpu as pltpu

HIDDEN = 64          # logical hidden width (nn.Linear(., 64))
HIDDEN_PAD = 128     # lane-padded hidden width used inside the kernel
DEFAULT_TILE = 1024  # batch rows per grid step for large batches
ROW_ALIGN = 8        # f32 sublane packing -> keep row tiles a multiple of 8


def _round_up(x, m):
    return ((x + m - 1) // m) * m


def _critic_kernel(s_ref, g_ref, w1s_ref, w1g_ref, b1_ref,
                   w2_ref, b2_ref, w3_ref, b3_ref, o_ref):
    # In-kernel bf16 cast of the streamed activations (free on VPU, keeps the
    # HBM stream at a single f32 read instead of a wrapper cast pass).
    s = s_ref[...].astype(jnp.bfloat16)
    g = g_ref[...].astype(jnp.bfloat16)

    # Layer 1: x @ W1 == state @ W1[:state_dim] + goal @ W1[state_dim:]
    h1 = jnp.dot(s, w1s_ref[...], preferred_element_type=jnp.float32)
    h1 = h1 + jnp.dot(g, w1g_ref[...], preferred_element_type=jnp.float32)
    h1 = jnp.maximum(h1 + b1_ref[...], 0.0)                  # f32 bias + ReLU

    # Layer 2 (bf16 operands -> MXU, f32 accumulate)
    h2 = jnp.dot(h1.astype(jnp.bfloat16), w2_ref[...],
                 preferred_element_type=jnp.float32)
    h2 = jnp.maximum(h2 + b2_ref[...], 0.0)

    # Output head
    v = jnp.dot(h2.astype(jnp.bfloat16), w3_ref[...],
                preferred_element_type=jnp.float32) + b3_ref[...]
    o_ref[...] = v.astype(o_ref.dtype)


def _prepare_params(params, state_dim):
    """Split W1, zero-pad hidden 64->128, cast matmul operands to bf16."""
    w1, b1, w2, b2, w3, b3 = params          # (in, out) layout
    pad_h = HIDDEN_PAD - HIDDEN
    w1p = jnp.pad(w1, ((0, 0), (0, pad_h)))
    w2p = jnp.pad(w2, ((0, pad_h), (0, pad_h)))
    w3p = jnp.pad(w3, ((0, pad_h), (0, 0)))
    b1p = jnp.pad(b1, ((0, 0), (0, pad_h))).astype(jnp.float32)
    b2p = jnp.pad(b2, ((0, 0), (0, pad_h))).astype(jnp.float32)
    b3p = b3.astype(jnp.float32)
    w1s = w1p[:state_dim].astype(jnp.bfloat16)
    w1g = w1p[state_dim:].astype(jnp.bfloat16)
    return (w1s, w1g, b1p, w2p.astype(jnp.bfloat16), b2p,
            w3p.astype(jnp.bfloat16), b3p)


def critic_high_forward(state, goal, params, *, tile=DEFAULT_TILE):
    """state: (B, state_dim), goal: (B, goal_dim) -> (B, 1) float32."""
    B, ds = state.shape
    _, dg = goal.shape
    w1s, w1g, b1, w2, b2, w3, b3 = _prepare_params(params, ds)

    state = state.astype(jnp.float32)
    goal = goal.astype(jnp.float32)

    # Batch tile: multiple of 8 rows, capped by the (rounded) batch size.
    tile = min(tile, _round_up(B, ROW_ALIGN))
    tile = _round_up(tile, ROW_ALIGN)

    grid = (pl.cdiv(B, tile),)
    batch_spec = lambda d: pl.BlockSpec((tile, d), lambda i: (i, 0))
    resident = lambda shape: pl.BlockSpec(shape, lambda i: (0, 0))

    out = pl.pallas_call(
        _critic_kernel,
        out_shape=jax.ShapeDtypeStruct((B, 1), jnp.float32),
        grid=grid,
        in_specs=[
            batch_spec(ds),                       # state tile (streams)
            batch_spec(dg),                       # goal tile (streams)
            resident((ds, HIDDEN_PAD)),           # W1[:state_dim]
            resident((dg, HIDDEN_PAD)),           # W1[state_dim:]
            resident((1, HIDDEN_PAD)),            # b1
            resident((HIDDEN_PAD, HIDDEN_PAD)),   # W2
            resident((1, HIDDEN_PAD)),            # b2
            resident((HIDDEN_PAD, 1)),            # W3
            resident((1, 1)),                     # b3
        ],
        out_specs=pl.BlockSpec((tile, 1), lambda i: (i, 0)),
        compiler_params=pltpu.CompilerParams(
            dimension_semantics=("parallel",)),
    )(state, goal, w1s, w1g, b1, w2, b2, w3, b3)
    return out


def init_params(key, state_dim, goal_dim):
    """nn.Linear-style U(-1/sqrt(fan_in), 1/sqrt(fan_in)) init, (in, out) layout."""
    d_in = state_dim + goal_dim
    ks = jax.random.split(key, 6)

    def lin(kw, kb, fan_in, fan_out):
        bound = 1.0 / jnp.sqrt(fan_in)
        w = jax.random.uniform(kw, (fan_in, fan_out), jnp.float32, -bound, bound)
        b = jax.random.uniform(kb, (1, fan_out), jnp.float32, -bound, bound)
        return w, b

    w1, b1 = lin(ks[0], ks[1], d_in, HIDDEN)
    w2, b2 = lin(ks[2], ks[3], HIDDEN, HIDDEN)
    w3, b3 = lin(ks[4], ks[5], HIDDEN, 1)
    return (w1, b1, w2, b2, w3, b3)


def reference_forward(state, goal, params):
    """Pure-JAX f32 reference of the PyTorch forward."""
    w1, b1, w2, b2, w3, b3 = params
    x = jnp.concatenate([state, goal], axis=1)
    h1 = jnp.maximum(x @ w1 + b1, 0.0)
    h2 = jnp.maximum(h1 @ w2 + b2, 0.0)
    return h2 @ w3 + b3


if __name__ == "__main__":
    key = jax.random.PRNGKey(0)
    k_s, k_g, k_p, k_s2, k_g2 = jax.random.split(key, 5)

    state_dim, goal_dim = 12, 4
    params = init_params(k_p, state_dim, goal_dim)

    # Small, spec-consistent shapes.
    batch = 8
    state = jax.random.normal(k_s, (batch, state_dim), jnp.float32)
    goal = jax.random.normal(k_g, (batch, goal_dim), jnp.float32)

    out = jax.block_until_ready(critic_high_forward(state, goal, params))
    ref = reference_forward(state, goal, params)
    assert out.shape == (batch, 1), out.shape
    # bf16 matmul operands with f32 accumulation -> ~1e-3 absolute error here.
    assert jnp.allclose(out, ref, atol=3e-2, rtol=3e-2), (out, ref)

    # Exercise the multi-step batch grid + partial boundary block (odd batch,
    # small tile).
    batch2 = 300
    state2 = jax.random.normal(k_s2, (batch2, state_dim), jnp.float32)
    goal2 = jax.random.normal(k_g2, (batch2, goal_dim), jnp.float32)
    out2 = jax.block_until_ready(
        critic_high_forward(state2, goal2, params, tile=128))
    ref2 = reference_forward(state2, goal2, params)
    assert out2.shape == (batch2, 1), out2.shape
    assert jnp.allclose(out2, ref2, atol=3e-2, rtol=3e-2)

    print("KERNEL_OK")
</pallas_src>

<mosaic_0001>
module attributes {stable_mosaic.version = 11 : i64} {
  func.func @_critic_kernel(%arg0: i32, %arg1: memref<8x12xf32, #tpu.memory_space<vmem>>, %arg2: memref<8x4xf32, #tpu.memory_space<vmem>>, %arg3: memref<12x128xbf16, #tpu.memory_space<vmem>>, %arg4: memref<4x128xbf16, #tpu.memory_space<vmem>>, %arg5: memref<1x128xf32, #tpu.memory_space<vmem>>, %arg6: memref<128x128xbf16, #tpu.memory_space<vmem>>, %arg7: memref<1x128xf32, #tpu.memory_space<vmem>>, %arg8: memref<128x1xbf16, #tpu.memory_space<vmem>>, %arg9: memref<1x1xf32, #tpu.memory_space<vmem>>, %arg10: memref<8x1xf32, #tpu.memory_space<vmem>>) attributes {dimension_semantics = [#tpu.dimension_semantics<parallel>], iteration_bounds = array<i64: 1>, scalar_prefetch = 0 : i64, scratch_operands = 0 : i64, tpu.core_type = #tpu.core_type<tc>, window_params = [{transform_indices = @transform_0, window_bounds = array<i64: 8, 12>}, {transform_indices = @transform_1, window_bounds = array<i64: 8, 4>}, {pipeline_mode = #tpu.pipeline_mode<synchronous>, transform_indices = @transform_2, window_bounds = array<i64: 12, 128>}, {pipeline_mode = #tpu.pipeline_mode<synchronous>, transform_indices = @transform_3, window_bounds = array<i64: 4, 128>}, {pipeline_mode = #tpu.pipeline_mode<synchronous>, transform_indices = @transform_4, window_bounds = array<i64: 1, 128>}, {pipeline_mode = #tpu.pipeline_mode<synchronous>, transform_indices = @transform_5, window_bounds = array<i64: 128, 128>}, {pipeline_mode = #tpu.pipeline_mode<synchronous>, transform_indices = @transform_6, window_bounds = array<i64: 1, 128>}, {pipeline_mode = #tpu.pipeline_mode<synchronous>, transform_indices = @transform_7, window_bounds = array<i64: 128, 1>}, {pipeline_mode = #tpu.pipeline_mode<synchronous>, transform_indices = @transform_8, window_bounds = array<i64: 1, 1>}, {transform_indices = @transform_9, window_bounds = array<i64: 8, 1>}]} {
    %c0 = arith.constant 0 : index
    %c0_0 = arith.constant 0 : index
    %0 = vector.load %arg1[%c0, %c0_0] : memref<8x12xf32, #tpu.memory_space<vmem>>, vector<8x12xf32>
    %1 = arith.truncf %0 : vector<8x12xf32> to vector<8x12xbf16>
    %c0_1 = arith.constant 0 : index
    %c0_2 = arith.constant 0 : index
    %2 = vector.load %arg2[%c0_1, %c0_2] : memref<8x4xf32, #tpu.memory_space<vmem>>, vector<8x4xf32>
    %3 = arith.truncf %2 : vector<8x4xf32> to vector<8x4xbf16>
    %c0_3 = arith.constant 0 : index
    %c0_4 = arith.constant 0 : index
    %4 = vector.load %arg3[%c0_3, %c0_4] : memref<12x128xbf16, #tpu.memory_space<vmem>>, vector<12x128xbf16>
    %cst = arith.constant dense<0.000000e+00> : vector<8x128xf32>
    %5 = tpu.matmul %1, %4, %cst {dimension_numbers = #tpu.dot_dimension_numbers<[1], [0], [0], [1], [0, 0, 1, 1], [], []>} : vector<8x12xbf16>, vector<12x128xbf16>, vector<8x128xf32> -> vector<8x128xf32>
    %c0_5 = arith.constant 0 : index
    %c0_6 = arith.constant 0 : index
    %6 = vector.load %arg4[%c0_5, %c0_6] : memref<4x128xbf16, #tpu.memory_space<vmem>>, vector<4x128xbf16>
    %cst_7 = arith.constant dense<0.000000e+00> : vector<8x128xf32>
    %7 = tpu.matmul %3, %6, %cst_7 {dimension_numbers = #tpu.dot_dimension_numbers<[1], [0], [0], [1], [0, 0, 1, 1], [], []>} : vector<8x4xbf16>, vector<4x128xbf16>, vector<8x128xf32> -> vector<8x128xf32>
    %8 = arith.addf %5, %7 : vector<8x128xf32>
    %c0_8 = arith.constant 0 : index
    %c0_9 = arith.constant 0 : index
    %9 = vector.load %arg5[%c0_8, %c0_9] : memref<1x128xf32, #tpu.memory_space<vmem>>, vector<1x128xf32>
    %10 = vector.broadcast %9 : vector<1x128xf32> to vector<8x128xf32>
    %11 = arith.addf %8, %10 : vector<8x128xf32>
    %cst_10 = arith.constant 0.000000e+00 : f32
    %12 = vector.broadcast %cst_10 : f32 to vector<8x128xf32>
    %13 = arith.maximumf %11, %12 : vector<8x128xf32>
    %14 = arith.truncf %13 : vector<8x128xf32> to vector<8x128xbf16>
    %c0_11 = arith.constant 0 : index
    %c0_12 = arith.constant 0 : index
    %15 = vector.load %arg6[%c0_11, %c0_12] : memref<128x128xbf16, #tpu.memory_space<vmem>>, vector<128x128xbf16>
    %cst_13 = arith.constant dense<0.000000e+00> : vector<8x128xf32>
    %16 = tpu.matmul %14, %15, %cst_13 {dimension_numbers = #tpu.dot_dimension_numbers<[1], [0], [0], [1], [0, 0, 1, 1], [], []>} : vector<8x128xbf16>, vector<128x128xbf16>, vector<8x128xf32> -> vector<8x128xf32>
    %c0_14 = arith.constant 0 : index
    %c0_15 = arith.constant 0 : index
    %17 = vector.load %arg7[%c0_14, %c0_15] : memref<1x128xf32, #tpu.memory_space<vmem>>, vector<1x128xf32>
    %18 = vector.broadcast %17 : vector<1x128xf32> to vector<8x128xf32>
    %19 = arith.addf %16, %18 : vector<8x128xf32>
    %cst_16 = arith.constant 0.000000e+00 : f32
    %20 = vector.broadcast %cst_16 : f32 to vector<8x128xf32>
    %21 = arith.maximumf %19, %20 : vector<8x128xf32>
    %22 = arith.truncf %21 : vector<8x128xf32> to vector<8x128xbf16>
    %c0_17 = arith.constant 0 : index
    %c0_18 = arith.constant 0 : index
    %23 = vector.load %arg8[%c0_17, %c0_18] : memref<128x1xbf16, #tpu.memory_space<vmem>>, vector<128x1xbf16>
    %cst_19 = arith.constant dense<0.000000e+00> : vector<8x1xf32>
    %24 = tpu.matmul %22, %23, %cst_19 {dimension_numbers = #tpu.dot_dimension_numbers<[1], [0], [0], [1], [0, 0, 1, 1], [], []>} : vector<8x128xbf16>, vector<128x1xbf16>, vector<8x1xf32> -> vector<8x1xf32>
    %c0_20 = arith.constant 0 : index
    %c0_21 = arith.constant 0 : index
    %25 = vector.load %arg9[%c0_20, %c0_21] : memref<1x1xf32, #tpu.memory_space<vmem>>, vector<1x1xf32>
    %26 = vector.broadcast %25 : vector<1x1xf32> to vector<8x1xf32>
    %27 = arith.addf %24, %26 : vector<8x1xf32>
    %c0_22 = arith.constant 0 : index
    %c0_23 = arith.constant 0 : index
    %28 = vector.load %arg10[%c0_22, %c0_23] : memref<8x1xf32, #tpu.memory_space<vmem>>, vector<8x1xf32>
    tpu.vector_store %arg10[%c0_22, %c0_23], %27 {strides = array<i32>} : memref<8x1xf32, #tpu.memory_space<vmem>>, vector<8x1xf32>,
    return
  }
  func.func @transform_0(%arg0: i32) -> (i32, i32) {
    %c0_i32 = arith.constant 0 : i32
    %c0_i32_0 = arith.constant 0 : i32
    return %arg0, %c0_i32 : i32, i32
  }
  func.func @transform_1(%arg0: i32) -> (i32, i32) {
    %c0_i32 = arith.constant 0 : i32
    %c0_i32_0 = arith.constant 0 : i32
    return %arg0, %c0_i32 : i32, i32
  }
  func.func @transform_2(%arg0: i32) -> (i32, i32) {
    %c0_i32 = arith.constant 0 : i32
    %c0_i32_0 = arith.constant 0 : i32
    %c0_i32_1 = arith.constant 0 : i32
    return %c0_i32, %c0_i32_0 : i32, i32
  }
  func.func @transform_3(%arg0: i32) -> (i32, i32) {
    %c0_i32 = arith.constant 0 : i32
    %c0_i32_0 = arith.constant 0 : i32
    %c0_i32_1 = arith.constant 0 : i32
    return %c0_i32, %c0_i32_0 : i32, i32
  }
  func.func @transform_4(%arg0: i32) -> (i32, i32) {
    %c0_i32 = arith.constant 0 : i32
    %c0_i32_0 = arith.constant 0 : i32
    %c0_i32_1 = arith.constant 0 : i32
    return %c0_i32, %c0_i32_0 : i32, i32
  }
  func.func @transform_5(%arg0: i32) -> (i32, i32) {
    %c0_i32 = arith.constant 0 : i32
    %c0_i32_0 = arith.constant 0 : i32
    %c0_i32_1 = arith.constant 0 : i32
    return %c0_i32, %c0_i32_0 : i32, i32
  }
  func.func @transform_6(%arg0: i32) -> (i32, i32) {
    %c0_i32 = arith.constant 0 : i32
    %c0_i32_0 = arith.constant 0 : i32
    %c0_i32_1 = arith.constant 0 : i32
    return %c0_i32, %c0_i32_0 : i32, i32
  }
  func.func @transform_7(%arg0: i32) -> (i32, i32) {
    %c0_i32 = arith.constant 0 : i32
    %c0_i32_0 = arith.constant 0 : i32
    %c0_i32_1 = arith.constant 0 : i32
    return %c0_i32, %c0_i32_0 : i32, i32
  }
  func.func @transform_8(%arg0: i32) -> (i32, i32) {
    %c0_i32 = arith.constant 0 : i32
    %c0_i32_0 = arith.constant 0 : i32
    %c0_i32_1 = arith.constant 0 : i32
    return %c0_i32, %c0_i32_0 : i32, i32
  }
  func.func @transform_9(%arg0: i32) -> (i32, i32) {
    %c0_i32 = arith.constant 0 : i32
    %c0_i32_0 = arith.constant 0 : i32
    return %arg0, %c0_i32 : i32, i32
  }
}

</mosaic_0001>

<llo_original>
// kernel: tpu_custom_call.1
$region0: #{tpu_custom_call.1}
  #allocation0 [shape = 'u32[]', space=smem, size = 0x4, offset = 0x4, fixed_abs, tag = 'smem constant byte address 0x4 - core index']
  #allocation1 [shape = 'u32[144,128]{1,0:T(1,128)}', space=vmem, size = 0x12000, scoped, tag = 'internal scratch']
  #allocation2 [shape = 'f32[1,1]{1,0:T(1,128)S(1)}', space=vmem, size = 0x200, scoped, tag = 'scoped memory for tpu_custom_call.1']
  %s0 = inlined_call_operand.vmem [shape: f32[8,12], index: 0, kind: input, shape index: {}]
  %s1 = inlined_call_operand.vmem [shape: f32[8,4], index: 1, kind: input, shape index: {}]
  %s2 = inlined_call_operand.vmem [shape: bf16[12,128], index: 2, kind: input, shape index: {}]
  %s3 = inlined_call_operand.vmem [shape: bf16[4,128], index: 3, kind: input, shape index: {}]
  %s4 = inlined_call_operand.vmem [shape: f32[1,128], index: 4, kind: input, shape index: {}]
  %s5 = inlined_call_operand.vmem [shape: bf16[128,128], index: 5, kind: input, shape index: {}]
  %s6 = inlined_call_operand.vmem [shape: f32[1,128], index: 6, kind: input, shape index: {}]
  %s7 = inlined_call_operand.vmem [shape: bf16[128,1], index: 7, kind: input, shape index: {}]
  %s8 = inlined_call_operand.<no memory space> [shape: f32[1,1], index: 8, kind: input, shape index: {}]
  %s9 = inlined_call_operand.vmem [shape: f32[8,1], index: 9, kind: output, shape index: {}]
  %s10 = sld [smem:[#allocation0]]
  $region46: #{tpu_custom_call.1} parent=0
    _
  %s12 = ssub.s32 1, %s10
  %s13 = scalar_select 0, %s12, %s10
  %v14 = vstv %s8
  %15 = vst [vmem:[#allocation2] sm:$0x1] %v14
  // Predicated region
  $region2: #{tpu_custom_call.1} parent=0 // pred_check
    _
  $region3: #{tpu_custom_call.1} parent=0 // pred_check_branch
    %17 = sbr.rel (0) target = $region5
  $region4: #{tpu_custom_call.1} parent=0 // pred_region
    _
  $region5: #{tpu_custom_call.1} parent=0 // pred_fallthru
    _
  // Predicated region
  $region6: #{tpu_custom_call.1} parent=0 // pred_check
    _
  $region7: #{tpu_custom_call.1} parent=0 // pred_check_branch
    %19 = sbr.rel (0) target = $region9
  $region8: #{tpu_custom_call.1} parent=0 // pred_region
    _
  $region9: #{tpu_custom_call.1} parent=0 // pred_fallthru
    _
  // Predicated region
  $region10: #{tpu_custom_call.1} parent=0 // pred_check
    _
  $region11: #{tpu_custom_call.1} parent=0 // pred_check_branch
    %21 = sbr.rel (0) target = $region13
  $region12: #{tpu_custom_call.1} parent=0 // pred_region
    _
  $region13: #{tpu_custom_call.1} parent=0 // pred_fallthru
    _
  // Predicated region
  $region14: #{tpu_custom_call.1} parent=0 // pred_check
    _
  $region15: #{tpu_custom_call.1} parent=0 // pred_check_branch
    %23 = sbr.rel (0) target = $region17
  $region16: #{tpu_custom_call.1} parent=0 // pred_region
    _
  $region17: #{tpu_custom_call.1} parent=0 // pred_fallthru
    _
  // Predicated region
  $region18: #{tpu_custom_call.1} parent=0 // pred_check
    _
  $region19: #{tpu_custom_call.1} parent=0 // pred_check_branch
    %25 = sbr.rel (0) target = $region21
  $region20: #{tpu_custom_call.1} parent=0 // pred_region
    _
  $region21: #{tpu_custom_call.1} parent=0 // pred_fallthru
    _
  // Predicated region
  $region22: #{tpu_custom_call.1} parent=0 // pred_check
    _
  $region23: #{tpu_custom_call.1} parent=0 // pred_check_branch
    %27 = sbr.rel (0) target = $region25
  $region24: #{tpu_custom_call.1} parent=0 // pred_region
    _
  $region25: #{tpu_custom_call.1} parent=0 // pred_fallthru
    _
  // Predicated region
  $region26: #{tpu_custom_call.1} parent=0 // pred_check
    _
  $region27: #{tpu_custom_call.1} parent=0 // pred_check_branch
    %29 = sbr.rel (0) target = $region29
  $region28: #{tpu_custom_call.1} parent=0 // pred_region
    _
  $region29: #{tpu_custom_call.1} parent=0 // pred_fallthru
    _
  // Predicated region
  $region30: #{tpu_custom_call.1} parent=0 // pred_check
    _
  $region31: #{tpu_custom_call.1} parent=0 // pred_check_branch
    %31 = sbr.rel (0) target = $region33
  $region32: #{tpu_custom_call.1} parent=0 // pred_region
    _
  $region33: #{tpu_custom_call.1} parent=0 // pred_fallthru
    _
  // Predicated region
  $region34: #{tpu_custom_call.1} parent=0 // pred_check
    _
  $region35: #{tpu_custom_call.1} parent=0 // pred_check_branch
    %33 = sbr.rel (0) target = $region37
  $region36: #{tpu_custom_call.1} parent=0 // pred_region
    _
  $region37: #{tpu_custom_call.1} parent=0 // pred_fallthru
    _
  %v35 = vld [vmem:[%s0] sm:$0xff]
  %v36 = vpack.c.bf16 %v35, %v35
  %v37 = vld [vmem:[%s1] sm:$0xff]
  %v38 = vpack.c.bf16 %v37, %v37
  %v39 = vld [vmem:[%s2] sm:$0xf]
  %v40 = vld [vmem:[%s2 + $0x4] sm:$0x3]
  %v41 = vld [vmem:[%s3] sm:$0x3]
  %vm42 = vcmask 31744
  %v44 = vsel %vm42, %v38, 0
  %vm46 = vcmask 1041408
  %v48 = vsel %vm46, %v41, 0
  %50 = vmatprep.subr.bf16.mxu0 0
  %51 = vmatpush1.bf16.msra.mxu0 %v48
  %52 = vmatprep.subr.bf16.mxu0 0
  %53 = vmatpush1.bf16.msra.mxu0 0
  %54 = vmatprep.subr.bf16.mxu0 0
  %55 = vmatpush1.bf16.msra.mxu0 0
  %56 = vmatprep.subr.bf16.mxu0 0
  %57 = vmatpush1.bf16.msra.mxu0 0
  %58 = vmatprep.subr.bf16.mxu0 0
  %59 = vmatpush1.bf16.msra.mxu0 0
  %60 = vmatprep.subr.bf16.mxu0 0
  %61 = vmatpush1.bf16.msra.mxu0 0
  %62 = vmatprep.subr.bf16.mxu0 0
  %63 = vmatpush1.bf16.msra.mxu0 0
  %64 = vmatprep.subr.bf16.mxu0 0
  %65 = vmatpush1.bf16.msra.mxu0 0
  %66 = vmatprep.subr.bf16.mxu0 0
  %67 = vmatpush1.bf16.msra.mxu0 0
  %68 = vmatprep.subr.bf16.mxu0 0
  %69 = vmatpush1.bf16.msra.mxu0 0
  %70 = vmatprep.subr.bf16.mxu0 0
  %71 = vmatpush1.bf16.msra.mxu0 0
  %72 = vmatprep.subr.bf16.mxu0 0
  %73 = vmatpush1.bf16.msra.mxu0 0
  %74 = vmatprep.subr.bf16.mxu0 0
  %75 = vmatpush1.bf16.msra.mxu0 0
  %76 = vmatprep.subr.bf16.mxu0 0
  %77 = vmatpush1.bf16.msra.mxu0 0
  %78 = vmatprep.subr.bf16.mxu0 0
  %79 = vmatpush1.bf16.msra.mxu0 0
  %80 = vmatprep.subr.bf16.mxu0 0
  %81 = vmatpush1.bf16.msra.mxu0 0
  %82 = vmatprep.mubr.bf16.mxu0 0
  %83 = vmatmul.mubr.bf16.gmra.mrb[0].mxu0 %v44
  %v84 = vpop.f32.mrb[0].mxu0
  %v85 = vadd.f32 0.0, %v84
  %v86 = vpop.f32.mrb[0].mxu0
  %v87 = vpop.f32.mrb[0].mxu0
  %v88 = vpop.f32.mrb[0].mxu0
  %89 = vdwg.mxu0
  %v92 = vunpack.c.l.b16 %v39
  %v93 = vunpack.c.l.b16 %v40
  %v94 = vpack.c.b16 %v93, %v92
  %vm95 = vcmask 97280
  %v97 = vsel %vm95, %v36, 0
  %vm99 = vcmask 1045504
  %v101 = vsel %vm99, %v94, 0
  %103 = vmatprep.subr.bf16.mxu0 0
  %104 = vmatpush1.bf16.msra.mxu0 %v101
  %105 = vmatprep.subr.bf16.mxu0 0
  %106 = vmatpush1.bf16.msra.mxu0 0
  %107 = vmatprep.subr.bf16.mxu0 0
  %108 = vmatpush1.bf16.msra.mxu0 0
  %109 = vmatprep.subr.bf16.mxu0 0
  %110 = vmatpush1.bf16.msra.mxu0 0
  %111 = vmatprep.subr.bf16.mxu0 0
  %112 = vmatpush1.bf16.msra.mxu0 0
  %113 = vmatprep.subr.bf16.mxu0 0
  %114 = vmatpush1.bf16.msra.mxu0 0
  %115 = vmatprep.subr.bf16.mxu0 0
  %116 = vmatpush1.bf16.msra.mxu0 0
  %117 = vmatprep.subr.bf16.mxu0 0
  %118 = vmatpush1.bf16.msra.mxu0 0
  %119 = vmatprep.subr.bf16.mxu0 0
  %120 = vmatpush1.bf16.msra.mxu0 0
  %121 = vmatprep.subr.bf16.mxu0 0
  %122 = vmatpush1.bf16.msra.mxu0 0
  %123 = vmatprep.subr.bf16.mxu0 0
  %124 = vmatpush1.bf16.msra.mxu0 0
  %125 = vmatprep.subr.bf16.mxu0 0
  %126 = vmatpush1.bf16.msra.mxu0 0
  %127 = vmatprep.subr.bf16.mxu0 0
  %128 = vmatpush1.bf16.msra.mxu0 0
  %129 = vmatprep.subr.bf16.mxu0 0
  %130 = vmatpush1.bf16.msra.mxu0 0
  %131 = vmatprep.subr.bf16.mxu0 0
  %132 = vmatpush1.bf16.msra.mxu0 0
  %133 = vmatprep.subr.bf16.mxu0 0
  %134 = vmatpush1.bf16.msra.mxu0 0
  %135 = vmatprep.mubr.bf16.mxu0 0
  %136 = vmatmul.mubr.bf16.gmra.mrb[0].mxu0 %v97
  %v137 = vpop.f32.mrb[0].mxu0
  %v138 = vadd.f32 %v85, %v137
  %v139 = vpop.f32.mrb[0].mxu0
  %v140 = vpop.f32.mrb[0].mxu0
  %v141 = vpop.f32.mrb[0].mxu0
  %142 = vdwg.mxu0
  %v143 = vld [vmem:[%s4] sm:$0x1]
  %v145 = vlaneseq
  %v146 = vshrl.u32 %v145, 7
  %v147 = vsub.s32 0, %v146
  %v148 = vrot.slane %v143, %v147
  %v150 = vadd.f32 %v138, %v148
  %v151 = vmax.f32 %v150, 0.0
  %v152 = vpack.c.bf16 %v151, %v151
  %v153 = vld [vmem:[%s5] sm:$0xf]
  %v154 = vld [vmem:[%s5 + $0x4] sm:$0xf]
  %v155 = vld [vmem:[%s5 + $0x8] sm:$0xf]
  %v156 = vld [vmem:[%s5 + $0xc] sm:$0xf]
  %v157 = vld [vmem:[%s5 + $0x10] sm:$0xf]
  %v158 = vld [vmem:[%s5 + $0x14] sm:$0xf]
  %v159 = vld [vmem:[%s5 + $0x18] sm:$0xf]
  %v160 = vld [vmem:[%s5 + $0x1c] sm:$0xf]
  %v161 = vld [vmem:[%s5 + $0x20] sm:$0xf]
  %v162 = vld [vmem:[%s5 + $0x24] sm:$0xf]
  %v163 = vld [vmem:[%s5 + $0x28] sm:$0xf]
  %v164 = vld [vmem:[%s5 + $0x2c] sm:$0xf]
  %v165 = vld [vmem:[%s5 + $0x30] sm:$0xf]
  %v166 = vld [vmem:[%s5 + $0x34] sm:$0xf]
  %v167 = vld [vmem:[%s5 + $0x38] sm:$0xf]
  %v168 = vld [vmem:[%s5 + $0x3c] sm:$0xf]
  %v169 = vld [vmem:[%s6] sm:$0x1]
  %v171 = vlaneseq
  %v172 = vshrl.u32 %v171, 7
  %v173 = vsub.s32 0, %v172
  %v174 = vrot.slane %v169, %v173
  %v192 = vunpack.c.l.b16 %v153
  %v193 = vunpack.c.l.b16 %v154
  %v194 = vunpack.c.l.b16 %v155
  %v195 = vunpack.c.l.b16 %v156
  %v196 = vunpack.c.l.b16 %v157
  %v197 = vunpack.c.l.b16 %v158
  %v198 = vunpack.c.l.b16 %v159
  %v199 = vunpack.c.l.b16 %v160
  %v200 = vunpack.c.l.b16 %v161
  %v201 = vunpack.c.l.b16 %v162
  %v202 = vunpack.c.l.b16 %v163
  %v203 = vunpack.c.l.b16 %v164
  %v204 = vunpack.c.l.b16 %v165
  %v205 = vunpack.c.l.b16 %v166
  %v206 = vunpack.c.l.b16 %v167
  %v207 = vunpack.c.l.b16 %v168
  %v208 = vpack.c.b16 %v193, %v192
  %v209 = vpack.c.b16 %v195, %v194
  %v210 = vpack.c.b16 %v197, %v196
  %v211 = vpack.c.b16 %v199, %v198
  %v212 = vpack.c.b16 %v201, %v200
  %v213 = vpack.c.b16 %v203, %v202
  %v214 = vpack.c.b16 %v205, %v204
  %v215 = vpack.c.b16 %v207, %v206
  %224 = vmatprep.subr.bf16.mxu0 0
  %225 = vmatpush1.bf16.msra.mxu0 %v208
  %226 = vmatprep.subr.bf16.mxu0 0
  %227 = vmatpush1.bf16.msra.mxu0 %v209
  %228 = vmatprep.subr.bf16.mxu0 0
  %229 = vmatpush1.bf16.msra.mxu0 %v210
  %230 = vmatprep.subr.bf16.mxu0 0
  %231 = vmatpush1.bf16.msra.mxu0 %v211
  %232 = vmatprep.subr.bf16.mxu0 0
  %233 = vmatpush1.bf16.msra.mxu0 %v212
  %234 = vmatprep.subr.bf16.mxu0 0
  %235 = vmatpush1.bf16.msra.mxu0 %v213
  %236 = vmatprep.subr.bf16.mxu0 0
  %237 = vmatpush1.bf16.msra.mxu0 %v214
  %238 = vmatprep.subr.bf16.mxu0 0
  %239 = vmatpush1.bf16.msra.mxu0 %v215
  %240 = vmatprep.subr.bf16.mxu0 0
  %241 = vmatpush1.bf16.msra.mxu0 0
  %242 = vmatprep.subr.bf16.mxu0 0
  %243 = vmatpush1.bf16.msra.mxu0 0
  %244 = vmatprep.subr.bf16.mxu0 0
  %245 = vmatpush1.bf16.msra.mxu0 0
  %246 = vmatprep.subr.bf16.mxu0 0
  %247 = vmatpush1.bf16.msra.mxu0 0
  %248 = vmatprep.subr.bf16.mxu0 0
  %249 = vmatpush1.bf16.msra.mxu0 0
  %250 = vmatprep.subr.bf16.mxu0 0
  %251 = vmatpush1.bf16.msra.mxu0 0
  %252 = vmatprep.subr.bf16.mxu0 0
  %253 = vmatpush1.bf16.msra.mxu0 0
  %254 = vmatprep.subr.bf16.mxu0 0
  %255 = vmatpush1.bf16.msra.mxu0 0
  %256 = vmatprep.mubr.bf16.mxu0 0
  %257 = vmatmul.mubr.bf16.gmra.mrb[0].mxu0 %v152
  %v258 = vpop.f32.mrb[0].mxu0
  %v259 = vadd.f32 %v174, %v258
  %v260 = vpop.f32.mrb[0].mxu0
  %v261 = vpop.f32.mrb[0].mxu0
  %v262 = vpop.f32.mrb[0].mxu0
  %263 = vdwg.mxu0
  %v264 = vmax.f32 %v259, 0.0
  %v265 = vpack.c.bf16 %v264, %v264
  %v266 = vld [vmem:[%s7] sm:$0xf]
  %v267 = vld [vmem:[%s7 + $0x4] sm:$0xf]
  %v268 = vld [vmem:[%s7 + $0x8] sm:$0xf]
  %v269 = vld [vmem:[%s7 + $0xc] sm:$0xf]
  %v270 = vld [vmem:[%s7 + $0x10] sm:$0xf]
  %v271 = vld [vmem:[%s7 + $0x14] sm:$0xf]
  %v272 = vld [vmem:[%s7 + $0x18] sm:$0xf]
  %v273 = vld [vmem:[%s7 + $0x1c] sm:$0xf]
  %v274 = vld [vmem:[%s7 + $0x20] sm:$0xf]
  %v275 = vld [vmem:[%s7 + $0x24] sm:$0xf]
  %v276 = vld [vmem:[%s7 + $0x28] sm:$0xf]
  %v277 = vld [vmem:[%s7 + $0x2c] sm:$0xf]
  %v278 = vld [vmem:[%s7 + $0x30] sm:$0xf]
  %v279 = vld [vmem:[%s7 + $0x34] sm:$0xf]
  %v280 = vld [vmem:[%s7 + $0x38] sm:$0xf]
  %v281 = vld [vmem:[%s7 + $0x3c] sm:$0xf]
  %v282 = vld [vmem:[#allocation2] sm:$0x1]
  %v284 = vlaneseq
  %v285 = vshrl.u32 %v284, 7
  %v286 = vsub.s32 0, %v285
  %v287 = vrot.slane %v282, %v286
  %v305 = vunpack.c.l.b16 %v266
  %v306 = vunpack.c.l.b16 %v267
  %v307 = vunpack.c.l.b16 %v268
  %v308 = vunpack.c.l.b16 %v269
  %v309 = vunpack.c.l.b16 %v270
  %v310 = vunpack.c.l.b16 %v271
  %v311 = vunpack.c.l.b16 %v272
  %v312 = vunpack.c.l.b16 %v273
  %v313 = vunpack.c.l.b16 %v274
  %v314 = vunpack.c.l.b16 %v275
  %v315 = vunpack.c.l.b16 %v276
  %v316 = vunpack.c.l.b16 %v277
  %v317 = vunpack.c.l.b16 %v278
  %v318 = vunpack.c.l.b16 %v279
  %v319 = vunpack.c.l.b16 %v280
  %v320 = vunpack.c.l.b16 %v281
  %v321 = vpack.c.b16 %v306, %v305
  %v322 = vpack.c.b16 %v308, %v307
  %v323 = vpack.c.b16 %v310, %v309
  %v324 = vpack.c.b16 %v312, %v311
  %v325 = vpack.c.b16 %v314, %v313
  %v326 = vpack.c.b16 %v316, %v315
  %v327 = vpack.c.b16 %v318, %v317
  %v328 = vpack.c.b16 %v320, %v319
  %337 = vmatprep.subr.bf16.mxu0 0
  %338 = vmatpush1.bf16.msra.mxu0 %v321
  %339 = vmatprep.subr.bf16.mxu0 0
  %340 = vmatpush1.bf16.msra.mxu0 %v322
  %341 = vmatprep.subr.bf16.mxu0 0
  %342 = vmatpush1.bf16.msra.mxu0 %v323
  %343 = vmatprep.subr.bf16.mxu0 0
  %344 = vmatpush1.bf16.msra.mxu0 %v324
  %345 = vmatprep.subr.bf16.mxu0 0
  %346 = vmatpush1.bf16.msra.mxu0 %v325
  %347 = vmatprep.subr.bf16.mxu0 0
  %348 = vmatpush1.bf16.msra.mxu0 %v326
  %349 = vmatprep.subr.bf16.mxu0 0
  %350 = vmatpush1.bf16.msra.mxu0 %v327
  %351 = vmatprep.subr.bf16.mxu0 0
  %352 = vmatpush1.bf16.msra.mxu0 %v328
  %353 = vmatprep.subr.bf16.mxu0 0
  %354 = vmatpush1.bf16.msra.mxu0 0
  %355 = vmatprep.subr.bf16.mxu0 0
  %356 = vmatpush1.bf16.msra.mxu0 0
  %357 = vmatprep.subr.bf16.mxu0 0
  %358 = vmatpush1.bf16.msra.mxu0 0
  %359 = vmatprep.subr.bf16.mxu0 0
  %360 = vmatpush1.bf16.msra.mxu0 0
  %361 = vmatprep.subr.bf16.mxu0 0
  %362 = vmatpush1.bf16.msra.mxu0 0
  %363 = vmatprep.subr.bf16.mxu0 0
  %364 = vmatpush1.bf16.msra.mxu0 0
  %365 = vmatprep.subr.bf16.mxu0 0
  %366 = vmatpush1.bf16.msra.mxu0 0
  %367 = vmatprep.subr.bf16.mxu0 0
  %368 = vmatpush1.bf16.msra.mxu0 0
  %369 = vmatprep.mubr.bf16.mxu0 0
  %370 = vmatmul.mubr.bf16.gmra.mrb[0].mxu0 %v265
  %v371 = vpop.f32.mrb[0].mxu0
  %v372 = vadd.f32 %v287, %v371
  %v373 = vpop.f32.mrb[0].mxu0
  %v374 = vpop.f32.mrb[0].mxu0
  %v375 = vpop.f32.mrb[0].mxu0
  %376 = vdwg.mxu0
  %vm377 = vcmask 7168
  %378 = vst.msk [vmem:[%s9] sm:$0xff] %vm377, %v372
  // Predicated region
  $region38: #{tpu_custom_call.1} parent=0 // pred_check
    _
  $region39: #{tpu_custom_call.1} parent=0 // pred_check_branch
    %380 = sbr.rel (0) target = $region41
  $region40: #{tpu_custom_call.1} parent=0 // pred_region
    _
  $region41: #{tpu_custom_call.1} parent=0 // pred_fallthru
    _
  // Predicated region
  $region42: #{tpu_custom_call.1} parent=0 // pred_check
    _
  $region43: #{tpu_custom_call.1} parent=0 // pred_check_branch
    %382 = sbr.rel (0) target = $region45
  $region44: #{tpu_custom_call.1} parent=0 // pred_region
    _
  $region45: #{tpu_custom_call.1} parent=0 // pred_fallthru
    _

</llo_original>
